<compile_context>
chip_gen: v5e
topology: v5e:2x2
jax: 0.10.0
libtpu: 0.0.40
codegen_flags: <defaults>
</compile_context>

<pallas_src>
import jax
import jax.numpy as jnp
from jax.experimental import pallas as pl
from jax.experimental.pallas import tpu as pltpu


def _make_kernel(num_layers: int, n_in: int):
    """Kernel body for a fixed (static) layer count, batch-on-lanes layout."""

    def kernel(*refs):
        sT_ref = refs[0]          # (n_in, tb)   features x batch-tile
        o_ref = refs[-1]          # (n_out, tb)
        params = refs[1:-1]       # alternating W (out, in), b (out, 1)

        v = sT_ref[...]                                   # (n_in, tb) f32

        # --- layer 0 (fcs): folded into n_in rank-1 VPU FMAs (K is tiny) ---
        w0 = params[0][...]                               # (H0, n_in)
        h = params[1][...]                                # (H0, 1) bias
        for f in range(n_in):
            h = h + w0[:, f:f + 1] * v[f:f + 1, :]        # (H0, tb)
        if num_layers > 1:
            h = jnp.tanh(h)

        # --- hidden layers (fch) + final layer (fce): MXU matmuls W @ h ---
        for layer in range(1, num_layers):
            w = params[2 * layer][...]                    # (H_out, H_in)
            b = params[2 * layer + 1][...]                # (H_out, 1)
            h = jnp.dot(w, h, preferred_element_type=jnp.float32) + b
            if layer < num_layers - 1:                    # no tanh on fce
                h = jnp.tanh(h)

        o_ref[...] = h.astype(o_ref.dtype)                # lane-dense store

    return kernel


def fcnn_forward(s, weights, biases, tb=256):
    """s: (B, N_in) f32.  weights[i]: (in_i, out_i).  biases[i]: (out_i,)."""
    B, n_in = s.shape
    num_layers = len(weights)
    n_out = weights[-1].shape[1]

    # Pad batch up to a multiple of the tile; padded columns are sliced off.
    Bp = ((B + tb - 1) // tb) * tb
    sT = s.T                                              # (n_in, B) batch on lanes
    if Bp != B:
        sT = jnp.pad(sT, ((0, 0), (0, Bp - B)))

    # Transposed weights (out, in) and column biases (out, 1) — done once,
    # host/wrapper side, essentially free (params ~ a few KB).
    wT = [w.T for w in weights]
    b2 = [b.reshape(-1, 1) for b in biases]

    kernel = _make_kernel(num_layers, n_in)

    in_specs = [pl.BlockSpec((n_in, tb), lambda i: (0, i))]
    params = []
    for w, b in zip(wT, b2):
        in_specs.append(pl.BlockSpec(w.shape, lambda i: (0, 0)))  # resident
        in_specs.append(pl.BlockSpec(b.shape, lambda i: (0, 0)))  # resident
        params += [w, b]

    out_spec = pl.BlockSpec((n_out, tb), lambda i: (0, i))        # lane-dense

    # Advisory cost estimate so XLA schedules the call sensibly in a big graph.
    flops = 2 * B * sum(int(w.shape[0]) * int(w.shape[1]) for w in weights)
    transcendentals = B * sum(int(w.shape[1]) for w in weights[:-1])
    bytes_accessed = 4 * (sT.size + Bp * n_out
                          + sum(w.size + b.size for w, b in zip(weights, biases)))

    out_T = pl.pallas_call(
        kernel,
        out_shape=jax.ShapeDtypeStruct((n_out, Bp), jnp.float32),
        grid_spec=pltpu.PrefetchScalarGridSpec(
            num_scalar_prefetch=0,
            grid=(Bp // tb,),
            in_specs=in_specs,
            out_specs=out_spec,
        ),
        compiler_params=pltpu.CompilerParams(
            dimension_semantics=("parallel",)),
        cost_estimate=pl.CostEstimate(
            flops=flops,
            transcendentals=transcendentals,
            bytes_accessed=bytes_accessed),
    )(sT, *params)

    return out_T[:, :B].T                                 # (B, n_out)


def init_params(key, N_h, n_in=2, n_out=1):
    """Deterministic synthetic weights (shapes follow the torch module)."""
    dims = [n_in] + list(N_h) + [n_out]
    weights, biases = [], []
    for i in range(len(dims) - 1):
        key, kw, kb = jax.random.split(key, 3)
        fan_in = dims[i]
        scale = 1.0 / jnp.sqrt(jnp.float32(fan_in))
        weights.append(
            jax.random.uniform(kw, (dims[i], dims[i + 1]), jnp.float32,
                               minval=-scale, maxval=scale))
        biases.append(
            jax.random.uniform(kb, (dims[i + 1],), jnp.float32,
                               minval=-scale, maxval=scale))
    return weights, biases


def reference_forward(s, weights, biases):
    h = s
    for i, (W, b) in enumerate(zip(weights, biases)):
        h = h @ W + b[None, :]
        if i < len(weights) - 1:
            h = jnp.tanh(h)
    return h


if __name__ == "__main__":
    key = jax.random.PRNGKey(0)
    N_h = [32, 32]          # two hidden layers of width 32
    B = 512                 # batch of 2-D input points
    tb = 256                # lane-dense batch tile (multiple of 256), grid = 2

    key, ks = jax.random.split(key)
    s = jax.random.uniform(ks, (B, 2), jnp.float32)

    weights, biases = init_params(jax.random.PRNGKey(0), N_h, n_in=2, n_out=1)

    out = fcnn_forward(s, weights, biases, tb=tb)
    out = jax.block_until_ready(out)

    ref = reference_forward(s, weights, biases)
    assert out.shape == (B, 1)
    assert jnp.allclose(out, ref, atol=3e-5, rtol=3e-5)

    print("KERNEL_OK")
</pallas_src>

<mosaic_0001>
module attributes {stable_mosaic.version = 11 : i64} {
  func.func @kernel(%arg0: i32, %arg1: memref<2x256xf32, #tpu.memory_space<vmem>>, %arg2: memref<32x2xf32, #tpu.memory_space<vmem>>, %arg3: memref<32x1xf32, #tpu.memory_space<vmem>>, %arg4: memref<32x32xf32, #tpu.memory_space<vmem>>, %arg5: memref<32x1xf32, #tpu.memory_space<vmem>>, %arg6: memref<1x32xf32, #tpu.memory_space<vmem>>, %arg7: memref<1x1xf32, #tpu.memory_space<vmem>>, %arg8: memref<1x256xf32, #tpu.memory_space<vmem>>) attributes {dimension_semantics = [#tpu.dimension_semantics<parallel>], iteration_bounds = array<i64: 2>, scalar_prefetch = 0 : i64, scratch_operands = 0 : i64, tpu.core_type = #tpu.core_type<tc>, window_params = [{transform_indices = @transform_0, window_bounds = array<i64: 2, 256>}, {pipeline_mode = #tpu.pipeline_mode<synchronous>, transform_indices = @transform_1, window_bounds = array<i64: 32, 2>}, {pipeline_mode = #tpu.pipeline_mode<synchronous>, transform_indices = @transform_2, window_bounds = array<i64: 32, 1>}, {pipeline_mode = #tpu.pipeline_mode<synchronous>, transform_indices = @transform_3, window_bounds = array<i64: 32, 32>}, {pipeline_mode = #tpu.pipeline_mode<synchronous>, transform_indices = @transform_4, window_bounds = array<i64: 32, 1>}, {pipeline_mode = #tpu.pipeline_mode<synchronous>, transform_indices = @transform_5, window_bounds = array<i64: 1, 32>}, {pipeline_mode = #tpu.pipeline_mode<synchronous>, transform_indices = @transform_6, window_bounds = array<i64: 1, 1>}, {transform_indices = @transform_7, window_bounds = array<i64: 1, 256>}]} {
    %c0 = arith.constant 0 : index
    %c0_0 = arith.constant 0 : index
    %0 = vector.load %arg1[%c0, %c0_0] : memref<2x256xf32, #tpu.memory_space<vmem>>, vector<2x256xf32>
    %c0_1 = arith.constant 0 : index
    %c0_2 = arith.constant 0 : index
    %1 = vector.load %arg2[%c0_1, %c0_2] : memref<32x2xf32, #tpu.memory_space<vmem>>, vector<32x2xf32>
    %c0_3 = arith.constant 0 : index
    %c0_4 = arith.constant 0 : index
    %2 = vector.load %arg3[%c0_3, %c0_4] : memref<32x1xf32, #tpu.memory_space<vmem>>, vector<32x1xf32>
    %3 = vector.extract_strided_slice %1 {offsets = [0, 0], sizes = [32, 1], strides = [1, 1]} : vector<32x2xf32> to vector<32x1xf32>
    %4 = vector.extract_strided_slice %0 {offsets = [0, 0], sizes = [1, 256], strides = [1, 1]} : vector<2x256xf32> to vector<1x256xf32>
    %5 = vector.broadcast %3 : vector<32x1xf32> to vector<32x256xf32>
    %6 = vector.broadcast %4 : vector<1x256xf32> to vector<32x256xf32>
    %7 = arith.mulf %5, %6 : vector<32x256xf32>
    %8 = vector.broadcast %2 : vector<32x1xf32> to vector<32x256xf32>
    %9 = arith.addf %8, %7 : vector<32x256xf32>
    %10 = vector.extract_strided_slice %1 {offsets = [0, 1], sizes = [32, 1], strides = [1, 1]} : vector<32x2xf32> to vector<32x1xf32>
    %11 = vector.extract_strided_slice %0 {offsets = [1, 0], sizes = [1, 256], strides = [1, 1]} : vector<2x256xf32> to vector<1x256xf32>
    %12 = vector.broadcast %10 : vector<32x1xf32> to vector<32x256xf32>
    %13 = vector.broadcast %11 : vector<1x256xf32> to vector<32x256xf32>
    %14 = arith.mulf %12, %13 : vector<32x256xf32>
    %15 = arith.addf %9, %14 : vector<32x256xf32>
    %16 = math.tanh %15 : vector<32x256xf32>
    %c0_5 = arith.constant 0 : index
    %c0_6 = arith.constant 0 : index
    %17 = vector.load %arg4[%c0_5, %c0_6] : memref<32x32xf32, #tpu.memory_space<vmem>>, vector<32x32xf32>
    %c0_7 = arith.constant 0 : index
    %c0_8 = arith.constant 0 : index
    %18 = vector.load %arg5[%c0_7, %c0_8] : memref<32x1xf32, #tpu.memory_space<vmem>>, vector<32x1xf32>
    %cst = arith.constant dense<0.000000e+00> : vector<32x256xf32>
    %19 = tpu.matmul %17, %16, %cst {dimension_numbers = #tpu.dot_dimension_numbers<[1], [0], [0], [1], [0, 0, 1, 1], [], []>} : vector<32x32xf32>, vector<32x256xf32>, vector<32x256xf32> -> vector<32x256xf32>
    %20 = vector.broadcast %18 : vector<32x1xf32> to vector<32x256xf32>
    %21 = arith.addf %19, %20 : vector<32x256xf32>
    %22 = math.tanh %21 : vector<32x256xf32>
    %c0_9 = arith.constant 0 : index
    %c0_10 = arith.constant 0 : index
    %23 = vector.load %arg6[%c0_9, %c0_10] : memref<1x32xf32, #tpu.memory_space<vmem>>, vector<1x32xf32>
    %c0_11 = arith.constant 0 : index
    %c0_12 = arith.constant 0 : index
    %24 = vector.load %arg7[%c0_11, %c0_12] : memref<1x1xf32, #tpu.memory_space<vmem>>, vector<1x1xf32>
    %cst_13 = arith.constant dense<0.000000e+00> : vector<1x256xf32>
    %25 = tpu.matmul %23, %22, %cst_13 {dimension_numbers = #tpu.dot_dimension_numbers<[1], [0], [0], [1], [0, 0, 1, 1], [], []>} : vector<1x32xf32>, vector<32x256xf32>, vector<1x256xf32> -> vector<1x256xf32>
    %26 = vector.broadcast %24 : vector<1x1xf32> to vector<1x256xf32>
    %27 = arith.addf %25, %26 : vector<1x256xf32>
    %c0_14 = arith.constant 0 : index
    %c0_15 = arith.constant 0 : index
    %28 = vector.load %arg8[%c0_14, %c0_15] : memref<1x256xf32, #tpu.memory_space<vmem>>, vector<1x256xf32>
    tpu.vector_store %arg8[%c0_14, %c0_15], %27 {strides = array<i32>} : memref<1x256xf32, #tpu.memory_space<vmem>>, vector<1x256xf32>,
    return
  }
  func.func @transform_0(%arg0: i32) -> (i32, i32) {
    %c0_i32 = arith.constant 0 : i32
    %c0_i32_0 = arith.constant 0 : i32
    return %c0_i32, %arg0 : i32, i32
  }
  func.func @transform_1(%arg0: i32) -> (i32, i32) {
    %c0_i32 = arith.constant 0 : i32
    %c0_i32_0 = arith.constant 0 : i32
    %c0_i32_1 = arith.constant 0 : i32
    return %c0_i32, %c0_i32_0 : i32, i32
  }
  func.func @transform_2(%arg0: i32) -> (i32, i32) {
    %c0_i32 = arith.constant 0 : i32
    %c0_i32_0 = arith.constant 0 : i32
    %c0_i32_1 = arith.constant 0 : i32
    return %c0_i32, %c0_i32_0 : i32, i32
  }
  func.func @transform_3(%arg0: i32) -> (i32, i32) {
    %c0_i32 = arith.constant 0 : i32
    %c0_i32_0 = arith.constant 0 : i32
    %c0_i32_1 = arith.constant 0 : i32
    return %c0_i32, %c0_i32_0 : i32, i32
  }
  func.func @transform_4(%arg0: i32) -> (i32, i32) {
    %c0_i32 = arith.constant 0 : i32
    %c0_i32_0 = arith.constant 0 : i32
    %c0_i32_1 = arith.constant 0 : i32
    return %c0_i32, %c0_i32_0 : i32, i32
  }
  func.func @transform_5(%arg0: i32) -> (i32, i32) {
    %c0_i32 = arith.constant 0 : i32
    %c0_i32_0 = arith.constant 0 : i32
    %c0_i32_1 = arith.constant 0 : i32
    return %c0_i32, %c0_i32_0 : i32, i32
  }
  func.func @transform_6(%arg0: i32) -> (i32, i32) {
    %c0_i32 = arith.constant 0 : i32
    %c0_i32_0 = arith.constant 0 : i32
    %c0_i32_1 = arith.constant 0 : i32
    return %c0_i32, %c0_i32_0 : i32, i32
  }
  func.func @transform_7(%arg0: i32) -> (i32, i32) {
    %c0_i32 = arith.constant 0 : i32
    %c0_i32_0 = arith.constant 0 : i32
    return %c0_i32, %arg0 : i32, i32
  }
}

</mosaic_0001>

<llo_original>
// kernel: tpu_custom_call.1
$region0: #{tpu_custom_call.1}
  #allocation0 [shape = 'u32[]', space=smem, size = 0x4, offset = 0x4, fixed_abs, tag = 'smem constant byte address 0x4 - core index']
  #allocation1 [shape = 'u32[72,128]{1,0:T(1,128)}', space=vmem, size = 0x9000, scoped, tag = 'internal scratch']
  #allocation2 [shape = 'f32[1,1]{1,0:T(1,128)S(1)}', space=vmem, size = 0x200, scoped, tag = 'scoped memory for tpu_custom_call.1']
  %s0 = inlined_call_operand.vmem [shape: f32[2,512], index: 0, kind: input, shape index: {}]
  %s1 = inlined_call_operand.vmem [shape: f32[32,2], index: 1, kind: input, shape index: {}]
  %s2 = inlined_call_operand.vmem [shape: f32[32,1], index: 2, kind: input, shape index: {}]
  %s3 = inlined_call_operand.vmem [shape: f32[32,32], index: 3, kind: input, shape index: {}]
  %s4 = inlined_call_operand.vmem [shape: f32[32,1], index: 4, kind: input, shape index: {}]
  %s5 = inlined_call_operand.vmem [shape: f32[1,32], index: 5, kind: input, shape index: {}]
  %s6 = inlined_call_operand.<no memory space> [shape: f32[1,1], index: 6, kind: input, shape index: {}]
  %s7 = inlined_call_operand.hbm [shape: f32[1,512], index: 7, kind: output, shape index: {}]
  %s8 = sld [smem:[#allocation0]]
  $region61: #{tpu_custom_call.1} parent=0
    _
  %s10 = ssub.s32 1, %s8
  %s11 = scalar_select 0, %s10, %s8
  %v12 = vstv %s6
  %13 = vst [vmem:[#allocation2] sm:$0x1] %v12
  $region1: #{tpu_custom_call.1} parent=0
    #allocation3 [shape = 'u8[2048]{0}', space=vmem, size = 0x800, scoped, tag = 'output window, operand 0']
    #allocation4 [shape = 's32[2]{0}', space=sflag, size = 0x8, scoped, tag = 'scoped memory for tpu_custom_call.1']
    %14 = vsyncpa [#allocation4], 0
    %s15 = scalar_lea.sflag [#allocation4], 1
    %16 = vsyncpa %s15, 0
    loop: start=0, step=1, limit=4
    $region2: #{tpu_custom_call.1} parent=1 // loop_pre_header
      _
    $region3: #{tpu_custom_call.1} parent=1 // loop_header
      %s18 = sphi 0, %s22
      %p19 = scmp.ge.s32.totalorder %s18, 4
      %s28 = sphi 0, %s30
      %s31 = sphi 0, %s28
      %s32 = sphi 0, %s31
      %s48 = sphi 0, %s32
      %s52 = sphi 0, %s52
      %s54 = sphi 0, %s52
      %s55 = sphi 0, %s54
      %s69 = sphi 0, %s55
      %s73 = sphi 0, %s73
      %s75 = sphi 0, %s73
      %s76 = sphi 0, %s75
      %s90 = sphi 0, %s76
      %s94 = sphi 0, %s94
      %s96 = sphi 0, %s94
      %s97 = sphi 0, %s96
      %s111 = sphi 0, %s97
      %s115 = sphi 0, %s115
      %s117 = sphi 0, %s115
      %s118 = sphi 0, %s117
      %s132 = sphi 0, %s118
      %s136 = sphi 0, %s136
      %s138 = sphi 0, %s136
      %s139 = sphi 0, %s138
      %s153 = sphi 0, %s139
      %s157 = sphi 0, %s157
      %s159 = sphi 0, %s157
      %s160 = sphi 0, %s159
      %s174 = sphi 0, %s160
      %s180 = sphi 0, %s182
      %s183 = sphi 0, %s180
      %s184 = sphi 0, %s183
      %s200 = sphi 0, %s184
    $region4: #{tpu_custom_call.1} parent=1 // loop_header_branch
      %21 = sbr.rel (%p19) target = $region8
    $region5: #{tpu_custom_call.1} parent=1 // loop_body
      %s23 = ssub.s32 %s18, 1
      %s24 = ssub.s32 %s18, 2
      %s25 = sadd.s32 %s18, 1
      %s26 = ssub.s32 %s18, %s25
      %p27 = scmp.eq.s32.totalorder %s26, 0
      %s29 = sadd.s32 %s28, 1
      %s30 = scalar_select %p27, %s28, %s29
      %p33 = pneg %p27
      %p34 = scmp.eq.s32.totalorder %s18, 1
      %p35 = por %p33, %p34
      %p36 = scmp.ne.s32.totalorder %s28, %s31
      %p37 = scmp.eq.s32.totalorder %s18, 0
      %p38 = por %p36, %p37
      %p39 = scmp.ne.s32.totalorder %s28, %s31
      %p40 = scmp.eq.s32.totalorder %s23, 1
      %p41 = por %p39, %p40
      %p42 = scmp.ne.s32.totalorder %s31, %s32
      %p43 = scmp.eq.s32.totalorder %s23, 0
      %p44 = por %p42, %p43
      %p45 = scmp.ne.s32.totalorder %s31, %s32
      %p46 = scmp.eq.s32.totalorder %s24, 1
      %p47 = por %p45, %p46
      %p49 = scmp.ne.s32.totalorder %s32, %s48
      %p50 = scmp.eq.s32.totalorder %s24, 0
      %p51 = por %p49, %p50
      %s53 = sadd.s32 %s52, 1
      %p56 = scmp.eq.s32.totalorder %s18, 1
      %p57 = scmp.ne.s32.totalorder %s52, %s54
      %p58 = scmp.eq.s32.totalorder %s18, 0
      %p59 = por %p57, %p58
      %p60 = scmp.ne.s32.totalorder %s52, %s54
      %p61 = scmp.eq.s32.totalorder %s23, 1
      %p62 = por %p60, %p61
      %p63 = scmp.ne.s32.totalorder %s54, %s55
      %p64 = scmp.eq.s32.totalorder %s23, 0
      %p65 = por %p63, %p64
      %p66 = scmp.ne.s32.totalorder %s54, %s55
      %p67 = scmp.eq.s32.totalorder %s24, 1
      %p68 = por %p66, %p67
      %p70 = scmp.ne.s32.totalorder %s55, %s69
      %p71 = scmp.eq.s32.totalorder %s24, 0
      %p72 = por %p70, %p71
      %s74 = sadd.s32 %s73, 1
      %p77 = scmp.eq.s32.totalorder %s18, 1
      %p78 = scmp.ne.s32.totalorder %s73, %s75
      %p79 = scmp.eq.s32.totalorder %s18, 0
      %p80 = por %p78, %p79
      %p81 = scmp.ne.s32.totalorder %s73, %s75
      %p82 = scmp.eq.s32.totalorder %s23, 1
      %p83 = por %p81, %p82
      %p84 = scmp.ne.s32.totalorder %s75, %s76
      %p85 = scmp.eq.s32.totalorder %s23, 0
      %p86 = por %p84, %p85
      %p87 = scmp.ne.s32.totalorder %s75, %s76
      %p88 = scmp.eq.s32.totalorder %s24, 1
      %p89 = por %p87, %p88
      %p91 = scmp.ne.s32.totalorder %s76, %s90
      %p92 = scmp.eq.s32.totalorder %s24, 0
      %p93 = por %p91, %p92
      %s95 = sadd.s32 %s94, 1
      %p98 = scmp.eq.s32.totalorder %s18, 1
      %p99 = scmp.ne.s32.totalorder %s94, %s96
      %p100 = scmp.eq.s32.totalorder %s18, 0
      %p101 = por %p99, %p100
      %p102 = scmp.ne.s32.totalorder %s94, %s96
      %p103 = scmp.eq.s32.totalorder %s23, 1
      %p104 = por %p102, %p103
      %p105 = scmp.ne.s32.totalorder %s96, %s97
      %p106 = scmp.eq.s32.totalorder %s23, 0
      %p107 = por %p105, %p106
      %p108 = scmp.ne.s32.totalorder %s96, %s97
      %p109 = scmp.eq.s32.totalorder %s24, 1
      %p110 = por %p108, %p109
      %p112 = scmp.ne.s32.totalorder %s97, %s111
      %p113 = scmp.eq.s32.totalorder %s24, 0
      %p114 = por %p112, %p113
      %s116 = sadd.s32 %s115, 1
      %p119 = scmp.eq.s32.totalorder %s18, 1
      %p120 = scmp.ne.s32.totalorder %s115, %s117
      %p121 = scmp.eq.s32.totalorder %s18, 0
      %p122 = por %p120, %p121
      %p123 = scmp.ne.s32.totalorder %s115, %s117
      %p124 = scmp.eq.s32.totalorder %s23, 1
      %p125 = por %p123, %p124
      %p126 = scmp.ne.s32.totalorder %s117, %s118
      %p127 = scmp.eq.s32.totalorder %s23, 0
      %p128 = por %p126, %p127
      %p129 = scmp.ne.s32.totalorder %s117, %s118
      %p130 = scmp.eq.s32.totalorder %s24, 1
      %p131 = por %p129, %p130
      %p133 = scmp.ne.s32.totalorder %s118, %s132
      %p134 = scmp.eq.s32.totalorder %s24, 0
      %p135 = por %p133, %p134
      %s137 = sadd.s32 %s136, 1
      %p140 = scmp.eq.s32.totalorder %s18, 1
      %p141 = scmp.ne.s32.totalorder %s136, %s138
      %p142 = scmp.eq.s32.totalorder %s18, 0
      %p143 = por %p141, %p142
      %p144 = scmp.ne.s32.totalorder %s136, %s138
      %p145 = scmp.eq.s32.totalorder %s23, 1
      %p146 = por %p144, %p145
      %p147 = scmp.ne.s32.totalorder %s138, %s139
      %p148 = scmp.eq.s32.totalorder %s23, 0
      %p149 = por %p147, %p148
      %p150 = scmp.ne.s32.totalorder %s138, %s139
      %p151 = scmp.eq.s32.totalorder %s24, 1
      %p152 = por %p150, %p151
      %p154 = scmp.ne.s32.totalorder %s139, %s153
      %p155 = scmp.eq.s32.totalorder %s24, 0
      %p156 = por %p154, %p155
      %s158 = sadd.s32 %s157, 1
      %p161 = scmp.eq.s32.totalorder %s18, 1
      %p162 = scmp.ne.s32.totalorder %s157, %s159
      %p163 = scmp.eq.s32.totalorder %s18, 0
      %p164 = por %p162, %p163
      %p165 = scmp.ne.s32.totalorder %s157, %s159
      %p166 = scmp.eq.s32.totalorder %s23, 1
      %p167 = por %p165, %p166
      %p168 = scmp.ne.s32.totalorder %s159, %s160
      %p169 = scmp.eq.s32.totalorder %s23, 0
      %p170 = por %p168, %p169
      %p171 = scmp.ne.s32.totalorder %s159, %s160
      %p172 = scmp.eq.s32.totalorder %s24, 1
      %p173 = por %p171, %p172
      %p175 = scmp.ne.s32.totalorder %s160, %s174
      %p176 = scmp.eq.s32.totalorder %s24, 0
      %p177 = por %p175, %p176
      %s178 = ssub.s32 %s18, %s25
      %p179 = scmp.eq.s32.totalorder %s178, 0
      %s181 = sadd.s32 %s180, 1
      %s182 = scalar_select %p179, %s180, %s181
      %p185 = pneg %p179
      %p186 = scmp.eq.s32.totalorder %s18, 1
      %p187 = por %p185, %p186
      %p188 = scmp.ne.s32.totalorder %s180, %s183
      %p189 = scmp.eq.s32.totalorder %s18, 0
      %p190 = por %p188, %p189
      %p191 = scmp.ne.s32.totalorder %s180, %s183
      %p192 = scmp.eq.s32.totalorder %s23, 1
      %p193 = por %p191, %p192
      %p194 = scmp.ne.s32.totalorder %s183, %s184
      %p195 = scmp.eq.s32.totalorder %s23, 0
      %p196 = por %p194, %p195
      %p197 = scmp.ne.s32.totalorder %s183, %s184
      %p198 = scmp.eq.s32.totalorder %s24, 1
      %p199 = por %p197, %p198
      %p201 = scmp.ne.s32.totalorder %s184, %s200
      %p202 = scmp.eq.s32.totalorder %s24, 0
      %p203 = por %p201, %p202
      %p204 = scmp.le.s32.totalorder 1, %s18
      %p205 = scmp.lt.s32.totalorder %s18, 3
      %p206 = pnand %p204, %p205
      %p207 = pneg %p206
      // Predicated region
      $region9: #{tpu_custom_call.1} parent=5 // pred_check
        _
      $region10: #{tpu_custom_call.1} parent=5 // pred_check_branch
        %209 = sbr.rel (%p206) target = $region12
      $region11: #{tpu_custom_call.1} parent=5 // pred_region
        %s210 = ssub.s32 %s18, 1
        // Predicated region
        $region13: #{tpu_custom_call.1} parent=11 // pred_check
          %p211 = pneg %p65
        $region14: #{tpu_custom_call.1} parent=11 // pred_check_branch
          %213 = sbr.rel (%p211) target = $region16
        $region15: #{tpu_custom_call.1} parent=11 // pred_region
          _
        $region16: #{tpu_custom_call.1} parent=11 // pred_fallthru
          _
        // Predicated region
        $region17: #{tpu_custom_call.1} parent=11 // pred_check
          %p214 = pneg %p86
        $region18: #{tpu_custom_call.1} parent=11 // pred_check_branch
          %216 = sbr.rel (%p214) target = $region20
        $region19: #{tpu_custom_call.1} parent=11 // pred_region
          _
        $region20: #{tpu_custom_call.1} parent=11 // pred_fallthru
          _
        // Predicated region
        $region21: #{tpu_custom_call.1} parent=11 // pred_check
          %p217 = pneg %p107
        $region22: #{tpu_custom_call.1} parent=11 // pred_check_branch
          %219 = sbr.rel (%p217) target = $region24
        $region23: #{tpu_custom_call.1} parent=11 // pred_region
          _
        $region24: #{tpu_custom_call.1} parent=11 // pred_fallthru
          _
        // Predicated region
        $region25: #{tpu_custom_call.1} parent=11 // pred_check
          %p220 = pneg %p128
        $region26: #{tpu_custom_call.1} parent=11 // pred_check_branch
          %222 = sbr.rel (%p220) target = $region28
        $region27: #{tpu_custom_call.1} parent=11 // pred_region
          _
        $region28: #{tpu_custom_call.1} parent=11 // pred_fallthru
          _
        // Predicated region
        $region29: #{tpu_custom_call.1} parent=11 // pred_check
          %p223 = pneg %p149
        $region30: #{tpu_custom_call.1} parent=11 // pred_check_branch
          %225 = sbr.rel (%p223) target = $region32
        $region31: #{tpu_custom_call.1} parent=11 // pred_region
          _
        $region32: #{tpu_custom_call.1} parent=11 // pred_fallthru
          _
        // Predicated region
        $region33: #{tpu_custom_call.1} parent=11 // pred_check
          %p226 = pneg %p170
        $region34: #{tpu_custom_call.1} parent=11 // pred_check_branch
          %228 = sbr.rel (%p226) target = $region36
        $region35: #{tpu_custom_call.1} parent=11 // pred_region
          _
        $region36: #{tpu_custom_call.1} parent=11 // pred_fallthru
          _
      $region12: #{tpu_custom_call.1} parent=5 // pred_fallthru
        _
      %p229 = scmp.lt.s32.totalorder %s18, 2
      // Predicated region
      $region37: #{tpu_custom_call.1} parent=5 // pred_check
        %p230 = pneg %p229
      $region38: #{tpu_custom_call.1} parent=5 // pred_check_branch
        %232 = sbr.rel (%p230) target = $region40
      $region39: #{tpu_custom_call.1} parent=5 // pred_region
        // Predicated region
        $region41: #{tpu_custom_call.1} parent=39 // pred_check
          %p233 = pneg %p38
        $region42: #{tpu_custom_call.1} parent=39 // pred_check_branch
          %235 = sbr.rel (%p233) target = $region44
        $region43: #{tpu_custom_call.1} parent=39 // pred_region
          %s236 = smul.u32 2, %s18
          %p237 = scmp.lt.s32.totalorder %s236, 3
          %s238 = scalar_select %p237, %s236, 3
          %s239 = smul.addr %s238, 2
          %s240 = scalar_lea.vmem %s0, %s239
          %s241 = smul.u32 2, %s18
        $region44: #{tpu_custom_call.1} parent=39 // pred_fallthru
          _
      $region40: #{tpu_custom_call.1} parent=5 // pred_fallthru
        _
      %p242 = scmp.le.s32.totalorder 1, %s18
      %p243 = scmp.lt.s32.totalorder %s18, 3
      %p244 = pnand %p242, %p243
      %p245 = pneg %p244
      // Predicated region
      $region45: #{tpu_custom_call.1} parent=5 // pred_check
        _
      $region46: #{tpu_custom_call.1} parent=5 // pred_check_branch
        %247 = sbr.rel (%p244) target = $region48
      $region47: #{tpu_custom_call.1} parent=5 // pred_region
        %s248 = ssub.s32 %s18, 1
        %s249 = smul.u32 2, %s23
        %p250 = scmp.lt.s32.totalorder %s249, 3
        %s251 = scalar_select %p250, %s249, 3
        %s252 = smul.addr %s251, 2
        %s253 = scalar_lea.vmem %s0, %s252
        %p254 = pneg %p44
        %p255 = pneg %p41
        %p256 = pneg %p65
        %p257 = pneg %p62
        %p258 = pneg %p86
        %p259 = pneg %p83
        %p260 = pneg %p107
        %p261 = pneg %p104
        %p262 = pneg %p128
        %p263 = pneg %p125
        %p264 = pneg %p149
        %p265 = pneg %p146
        %p266 = pneg %p170
        %p267 = pneg %p167
        %p268 = pneg %p196
        %p269 = pneg %p193
        %s270 = sand.u32 %s183, 1
        %s271 = scalar_lea.sflag [#allocation4], %s270
        %s272 = sand.u32 %s183, 1
        %s273 = smul.addr %s272, 2
        %s274 = scalar_lea.vmem [#allocation3], %s273
        %s275 = smul.u32 2, %s23
        %p276 = scmp.lt.s32.totalorder %s275, 3
        %s277 = scalar_select %p276, %s275, 3
        %s278 = smul.addr %s277, 2
        %s279 = scalar_lea.vmem %s0, %s278
        %s280 = smul.u32 2, %s23
        %s281 = smul.u32 2, %s23
        %v282 = vld [vmem:[%s279] sm:$0xf]
        %v283 = vld [vmem:[%s1] sm:$0xff]
        %v284 = vld [vmem:[%s1 + $0x8] sm:$0xff]
        %v285 = vld [vmem:[%s1 + $0x10] sm:$0xff]
        %v286 = vld [vmem:[%s1 + $0x18] sm:$0xff]
        %v287 = vld [vmem:[%s2] sm:$0xff]
        %v288 = vld [vmem:[%s2 + $0x8] sm:$0xff]
        %v289 = vld [vmem:[%s2 + $0x10] sm:$0xff]
        %v290 = vld [vmem:[%s2 + $0x18] sm:$0xff]
        %292 = vset.pattern.permute.xlu0 0
        %293 = vperm.xlu0 %292, %v283
        %v294 = vpop.permute.xlu0 %293
        %297 = vset.pattern.permute.xlu0 0
        %298 = vperm.xlu0 %297, %v284
        %v299 = vpop.permute.xlu0 %298
        %302 = vset.pattern.permute.xlu0 0
        %303 = vperm.xlu0 %302, %v285
        %v304 = vpop.permute.xlu0 %303
        %307 = vset.pattern.permute.xlu0 0
        %308 = vperm.xlu0 %307, %v286
        %v309 = vpop.permute.xlu0 %308
        %v312 = vperm.slane %v282, 0
        %v313 = vperm.slane %v282, 2
        %v316 = vperm.slane %v312, 0
        %v317 = vperm.slane %v313, 0
        %v318 = vmul.f32 %v294, %v316
        %v319 = vmul.f32 %v294, %v317
        %v320 = vmul.f32 %v299, %v316
        %v321 = vmul.f32 %v299, %v317
        %v322 = vmul.f32 %v304, %v316
        %v323 = vmul.f32 %v304, %v317
        %v324 = vmul.f32 %v309, %v316
        %v325 = vmul.f32 %v309, %v317
        %327 = vset.pattern.permute.xlu0 0
        %328 = vperm.xlu0 %327, %v287
        %v329 = vpop.permute.xlu0 %328
        %332 = vset.pattern.permute.xlu0 0
        %333 = vperm.xlu0 %332, %v288
        %v334 = vpop.permute.xlu0 %333
        %337 = vset.pattern.permute.xlu0 0
        %338 = vperm.xlu0 %337, %v289
        %v339 = vpop.permute.xlu0 %338
        %342 = vset.pattern.permute.xlu0 0
        %343 = vperm.xlu0 %342, %v290
        %v344 = vpop.permute.xlu0 %343
        %v346 = vadd.f32 %v329, %v318
        %v347 = vadd.f32 %v329, %v319
        %v348 = vadd.f32 %v334, %v320
        %v349 = vadd.f32 %v334, %v321
        %v350 = vadd.f32 %v339, %v322
        %v351 = vadd.f32 %v339, %v323
        %v352 = vadd.f32 %v344, %v324
        %v353 = vadd.f32 %v344, %v325
        %354 = vset.pattern.permute.xlu0 1
        %355 = vperm.xlu0 %354, %v283
        %v356 = vpop.permute.xlu0 %355
        %358 = vset.pattern.permute.xlu0 1
        %359 = vperm.xlu0 %358, %v284
        %v360 = vpop.permute.xlu0 %359
        %362 = vset.pattern.permute.xlu0 1
        %363 = vperm.xlu0 %362, %v285
        %v364 = vpop.permute.xlu0 %363
        %366 = vset.pattern.permute.xlu0 1
        %367 = vperm.xlu0 %366, %v286
        %v368 = vpop.permute.xlu0 %367
        %v370 = vperm.slane %v282, 1
        %v371 = vperm.slane %v282, 3
        %v374 = vperm.slane %v370, 1
        %v375 = vperm.slane %v371, 1
        %v376 = vmul.f32 %v356, %v374
        %v377 = vmul.f32 %v356, %v375
        %v378 = vmul.f32 %v360, %v374
        %v379 = vmul.f32 %v360, %v375
        %v380 = vmul.f32 %v364, %v374
        %v381 = vmul.f32 %v364, %v375
        %v382 = vmul.f32 %v368, %v374
        %v383 = vmul.f32 %v368, %v375
        %v384 = vadd.f32 %v346, %v376
        %v385 = vadd.f32 %v347, %v377
        %v386 = vadd.f32 %v348, %v378
        %v387 = vadd.f32 %v349, %v379
        %v388 = vadd.f32 %v350, %v380
        %v389 = vadd.f32 %v351, %v381
        %v390 = vadd.f32 %v352, %v382
        %v391 = vadd.f32 %v353, %v383
        %v392 = vtanh.pop %v384
        %v393 = vtanh.pop %v385
        %v394 = vtanh.pop %v386
        %v395 = vtanh.pop %v387
        %v396 = vtanh.pop %v388
        %v397 = vtanh.pop %v389
        %v398 = vtanh.pop %v390
        %v399 = vtanh.pop %v391
        %v400 = vld [vmem:[%s3] sm:$0xff]
        %v401 = vld [vmem:[%s3 + $0x8] sm:$0xff]
        %v402 = vld [vmem:[%s3 + $0x10] sm:$0xff]
        %v403 = vld [vmem:[%s3 + $0x18] sm:$0xff]
        %v404 = vld [vmem:[%s4] sm:$0xff]
        %v405 = vld [vmem:[%s4 + $0x8] sm:$0xff]
        %v406 = vld [vmem:[%s4 + $0x10] sm:$0xff]
        %v407 = vld [vmem:[%s4 + $0x18] sm:$0xff]
        %409 = vset.pattern.permute.xlu0 0
        %410 = vperm.xlu0 %409, %v404
        %v411 = vpop.permute.xlu0 %410
        %414 = vset.pattern.permute.xlu0 0
        %415 = vperm.xlu0 %414, %v405
        %v416 = vpop.permute.xlu0 %415
        %419 = vset.pattern.permute.xlu0 0
        %420 = vperm.xlu0 %419, %v406
        %v421 = vpop.permute.xlu0 %420
        %424 = vset.pattern.permute.xlu0 0
        %425 = vperm.xlu0 %424, %v407
        %v426 = vpop.permute.xlu0 %425
        %vm428 = vcmask 261120
        %v430 = vsel %vm428, %v400, 0
        %v433 = vsel %vm428, %v401, 0
        %v436 = vsel %vm428, %v402, 0
        %v439 = vsel %vm428, %v403, 0
        %441 = vmatpush.msra.mxu0 0.0
        %442 = vmatpush.msra.mxu0 0.0
        %443 = vmatpush.msra.mxu0 0.0
        %444 = vmatpush.msra.mxu0 0.0
        %445 = vmatpush.msra.mxu0 0.0
        %446 = vmatpush.msra.mxu0 0.0
        %447 = vmatpush.msra.mxu0 0.0
        %448 = vmatpush.msra.mxu0 0.0
        %449 = vmatpush.msra.mxu0 0.0
        %450 = vmatpush.msra.mxu0 0.0
        %451 = vmatpush.msra.mxu0 0.0
        %452 = vmatpush.msra.mxu0 0.0
        %453 = vmatpush.msra.mxu0 %v398
        %454 = vmatpush.msra.mxu0 %v396
        %455 = vmatpush.msra.mxu0 %v394
        %456 = vmatpush.msra.mxu0 %v392
        %457 = vmatmul.f32.gmra.mxu0 %v430
        %v458 = vpop.f32.mrf.mxu0
        %v459 = vadd.f32 %v411, %v458
        %460 = vmatmul.f32.gmra.mxu0 %v433
        %v461 = vpop.f32.mrf.mxu0
        %v462 = vadd.f32 %v416, %v461
        %463 = vmatmul.f32.gmra.mxu0 %v436
        %v464 = vpop.f32.mrf.mxu0
        %v465 = vadd.f32 %v421, %v464
        %466 = vmatmul.f32.gmra.mxu0 %v439
        %v467 = vpop.f32.mrf.mxu0
        %v468 = vadd.f32 %v426, %v467
        %469 = vdwg.mxu0
        %470 = vmatpush.msra.mxu0 0.0
        %471 = vmatpush.msra.mxu0 0.0
        %472 = vmatpush.msra.mxu0 0.0
        %473 = vmatpush.msra.mxu0 0.0
        %474 = vmatpush.msra.mxu0 0.0
        %475 = vmatpush.msra.mxu0 0.0
        %476 = vmatpush.msra.mxu0 0.0
        %477 = vmatpush.msra.mxu0 0.0
        %478 = vmatpush.msra.mxu0 0.0
        %479 = vmatpush.msra.mxu0 0.0
        %480 = vmatpush.msra.mxu0 0.0
        %481 = vmatpush.msra.mxu0 0.0
        %482 = vmatpush.msra.mxu0 %v399
        %483 = vmatpush.msra.mxu0 %v397
        %484 = vmatpush.msra.mxu0 %v395
        %485 = vmatpush.msra.mxu0 %v393
        %486 = vmatmul.f32.gmra.mxu0 %v430
        %v487 = vpop.f32.mrf.mxu0
        %v488 = vadd.f32 %v411, %v487
        %489 = vmatmul.f32.gmra.mxu0 %v433
        %v490 = vpop.f32.mrf.mxu0
        %v491 = vadd.f32 %v416, %v490
        %492 = vmatmul.f32.gmra.mxu0 %v436
        %v493 = vpop.f32.mrf.mxu0
        %v494 = vadd.f32 %v421, %v493
        %495 = vmatmul.f32.gmra.mxu0 %v439
        %v496 = vpop.f32.mrf.mxu0
        %v497 = vadd.f32 %v426, %v496
        %498 = vdwg.mxu0
        %v499 = vtanh.pop %v459
        %v500 = vtanh.pop %v488
        %v501 = vtanh.pop %v462
        %v502 = vtanh.pop %v491
        %v503 = vtanh.pop %v465
        %v504 = vtanh.pop %v494
        %v505 = vtanh.pop %v468
        %v506 = vtanh.pop %v497
        %v507 = vld [vmem:[%s5] sm:$0x1]
        %v508 = vld [vmem:[#allocation2] sm:$0x1]
        %510 = vset.pattern.permute.xlu0 0
        %511 = vperm.xlu0 %510, %v508
        %v512 = vpop.permute.xlu0 %511
        %v514 = vperm.slane %v512, 0
        %v516 = vsel %vm428, %v507, 0
        %518 = vmatpush.msra.mxu0 0.0
        %519 = vmatpush.msra.mxu0 0.0
        %520 = vmatpush.msra.mxu0 0.0
        %521 = vmatpush.msra.mxu0 0.0
        %522 = vmatpush.msra.mxu0 0.0
        %523 = vmatpush.msra.mxu0 0.0
        %524 = vmatpush.msra.mxu0 0.0
        %525 = vmatpush.msra.mxu0 0.0
        %526 = vmatpush.msra.mxu0 0.0
        %527 = vmatpush.msra.mxu0 0.0
        %528 = vmatpush.msra.mxu0 0.0
        %529 = vmatpush.msra.mxu0 0.0
        %530 = vmatpush.msra.mxu0 %v505
        %531 = vmatpush.msra.mxu0 %v503
        %532 = vmatpush.msra.mxu0 %v501
        %533 = vmatpush.msra.mxu0 %v499
        %534 = vmatmul.f32.gmra.mxu0 %v516
        %v535 = vpop.f32.mrf.mxu0
        %v536 = vadd.f32 %v514, %v535
        %537 = vdwg.mxu0
        %538 = vmatpush.msra.mxu0 0.0
        %539 = vmatpush.msra.mxu0 0.0
        %540 = vmatpush.msra.mxu0 0.0
        %541 = vmatpush.msra.mxu0 0.0
        %542 = vmatpush.msra.mxu0 0.0
        %543 = vmatpush.msra.mxu0 0.0
        %544 = vmatpush.msra.mxu0 0.0
        %545 = vmatpush.msra.mxu0 0.0
        %546 = vmatpush.msra.mxu0 0.0
        %547 = vmatpush.msra.mxu0 0.0
        %548 = vmatpush.msra.mxu0 0.0
        %549 = vmatpush.msra.mxu0 0.0
        %550 = vmatpush.msra.mxu0 %v506
        %551 = vmatpush.msra.mxu0 %v504
        %552 = vmatpush.msra.mxu0 %v502
        %553 = vmatpush.msra.mxu0 %v500
        %554 = vmatmul.f32.gmra.mxu0 %v516
        %v555 = vpop.f32.mrf.mxu0
        %v556 = vadd.f32 %v514, %v555
        %557 = vdwg.mxu0
        %v560 = vrot.slane %v556, 7
        %vm561 = vcmask 1040384
        %v562 = vsel %vm561, %v536, %v560
        %v564 = vlaneseq
        %vm565 = vcmp.ge.s32.totalorder %v564, 0
        %vm566 = vcmp.lt.s32.totalorder %v564, 256
        %vm567 = vmand %vm565, %vm566
        %568 = vst.msk [vmem:[%s274] sm:$0x3] %vm567, %v562
        %s569 = sand.u32 %s183, 1
        %s570 = scalar_lea.sflag [#allocation4], %s569
        %s571 = sand.u32 %s183, 1
        %s572 = smul.addr %s571, 2
        %s573 = scalar_lea.vmem [#allocation3], %s572
        // Predicated region
        $region49: #{tpu_custom_call.1} parent=47 // pred_check
          %p574 = pneg %p193
        $region50: #{tpu_custom_call.1} parent=47 // pred_check_branch
          %576 = sbr.rel (%p574) target = $region52
        $region51: #{tpu_custom_call.1} parent=47 // pred_region
          %s577 = smul.u32 2, %s23
          %579 = vsyncadd %s570, 0
          %s580 = scalar_lea.hbm %s7, %s577
          %s582 = sshll.u32 %s573, 4
          %s583 = int_to_ptr.vmem [resolvable:$true] %s582
          %s584 = sshll.u32 %s580, 4
          %s585 = int_to_ptr.hbm [resolvable:$true] %s584
          %587 = dma.vmem_to_hbm [thread:$0]  %s583, 32, %s585, %s570
        $region52: #{tpu_custom_call.1} parent=47 // pred_fallthru
          _
      $region48: #{tpu_custom_call.1} parent=5 // pred_fallthru
        _
      %p588 = scmp.le.s32.totalorder 2, %s18
      // Predicated region
      $region53: #{tpu_custom_call.1} parent=5 // pred_check
        %p589 = pneg %p588
      $region54: #{tpu_custom_call.1} parent=5 // pred_check_branch
        %591 = sbr.rel (%p589) target = $region56
      $region55: #{tpu_custom_call.1} parent=5 // pred_region
        %s592 = ssub.s32 %s18, 2
        // Predicated region
        $region57: #{tpu_custom_call.1} parent=55 // pred_check
          %p593 = pneg %p199
        $region58: #{tpu_custom_call.1} parent=55 // pred_check_branch
          %595 = sbr.rel (%p593) target = $region60
        $region59: #{tpu_custom_call.1} parent=55 // pred_region
          %s596 = sand.u32 %s184, 1
          %s597 = scalar_lea.sflag [#allocation4], %s596
          %s598 = sand.u32 %s184, 1
          %s599 = smul.addr %s598, 2
          %s600 = scalar_lea.vmem [#allocation3], %s599
          %602 = dma.done %s597, 32
        $region60: #{tpu_custom_call.1} parent=55 // pred_fallthru
          _
      $region56: #{tpu_custom_call.1} parent=5 // pred_fallthru
        _
    $region6: #{tpu_custom_call.1} parent=1 // loop_footer
      %s22 = sadd.s32 1, %s18
    $region7: #{tpu_custom_call.1} parent=1 // loop_footer_branch
      %17 = sbr.rel target = $region3
    $region8: #{tpu_custom_call.1} parent=1 // loop_exit
      _
    %603 = vsyncpa [#allocation4], 1
    %s604 = scalar_lea.sflag [#allocation4], 1
    %605 = vsyncpa %s604, 1

</llo_original>
